<compile_context>
chip_gen: v5e
topology: v5e:2x2
jax: 0.10.0
libtpu: 0.0.40
codegen_flags: <defaults>
</compile_context>

<pallas_src>
import math

import jax
import jax.numpy as jnp
from jax import lax
from jax.experimental import pallas as pl
from jax.experimental.pallas import tpu as pltpu

LANE = 128            # lane width (fast axis)
TM_GAMMA = 2048       # rows per block for gamma  -> 2048*128*4 B = 1 MiB / block
TM_LEARN = 512        # rows per block for learn  -> 256 KiB / block (compute-bound)
SUB = 16              # rows per in-kernel sub-chunk for the learn MLP (2 vregs / array)

INV_GAMMA = 1.0 / 2.2

# packed-parameter layout (f32, 593 scalars total)
_W1, _B1 = 0, 16
_W2, _B2 = 32, 288
_W3, _B3 = 304, 560
_W4, _B4 = 576, 592
_NPARAMS = 593


# ----------------------------- kernels --------------------------------------

def _gamma_kernel(x_ref, o_ref):
    x = x_ref[...]
    # x ** (1/2.2) == exp(log(x) / 2.2)  (matches pow semantics: 0 -> 0, <0 -> nan).
    # log / exp run on the EUP; the kernel stays HBM-bandwidth bound.
    o_ref[...] = jnp.exp(jnp.log(x) * INV_GAMMA).astype(o_ref.dtype)


def _learn_kernel(x_ref, p_ref, o_ref):
    """Lane-parallel 1->16->16->16->1 MLP + residual + sigmoid.

    x_ref/o_ref: (TM, 128) VMEM tiles.  p_ref: (593,) f32 in SMEM.
    Elements never leave the (sublane, lane) layout; the hidden state is 16 separate
    (SUB, 128) arrays and the 16x16 layers are unrolled scalar*vector FMA chains.
    """
    n_sub = x_ref.shape[0] // SUB   # static (ref shapes are known at trace time)

    def body(c, carry):
        r = pl.multiple_of(c * SUB, SUB)
        x = x_ref[pl.ds(r, SUB), :].astype(jnp.float32)          # (SUB, 128)

        # Linear(1, 16) + ReLU  -- per-hidden-unit broadcast FMA
        h = [jnp.maximum(x * p_ref[_W1 + j] + p_ref[_B1 + j], 0.0) for j in range(16)]

        # Linear(16, 16) + ReLU  -- unrolled 16x16 broadcast-FMA chain (VPU only)
        h2 = []
        for k in range(16):
            acc = h[0] * p_ref[_W2 + k]
            for j in range(1, 16):
                acc = acc + h[j] * p_ref[_W2 + j * 16 + k]
            h2.append(jnp.maximum(acc + p_ref[_B2 + k], 0.0))

        # Linear(16, 16) + ReLU
        h3 = []
        for k in range(16):
            acc = h2[0] * p_ref[_W3 + k]
            for j in range(1, 16):
                acc = acc + h2[j] * p_ref[_W3 + j * 16 + k]
            h3.append(jnp.maximum(acc + p_ref[_B3 + k], 0.0))

        # Linear(16, 1)
        res = h3[0] * p_ref[_W4]
        for j in range(1, 16):
            res = res + h3[j] * p_ref[_W4 + j]
        res = res + p_ref[_B4]

        y = jax.nn.sigmoid(res * 0.1 + x)                         # residual + sigmoid
        o_ref[pl.ds(r, SUB), :] = y.astype(o_ref.dtype)
        return carry

    lax.fori_loop(0, n_sub, body, 0)


# ----------------------------- wrappers -------------------------------------

def _round_up(a, m):
    return -(-a // m) * m


def _to_slab(x, tm_max, align):
    """Flatten x -> lane-dense (rows_pad, 128) slab; pad only the ragged tail (if any)."""
    n = x.size
    rows = max(_round_up(n, LANE) // LANE, 1)
    tm = min(_round_up(rows, align), tm_max)        # tm_max is a multiple of `align`
    rows_pad = _round_up(rows, tm)
    n_pad = rows_pad * LANE
    x_flat = x.reshape(-1)
    if n_pad != n:                                  # skipped for aligned inputs
        x_flat = jnp.pad(x_flat, (0, n_pad - n))
    return x_flat.reshape(rows_pad, LANE), tm, n


def _from_slab(out, n, orig_shape):
    if out.size != n:                               # only slice if we actually padded
        return out.reshape(-1)[:n].reshape(orig_shape)
    return out.reshape(orig_shape)


def _gamma(x):
    x2, tm, n = _to_slab(x, TM_GAMMA, 8)
    rows = x2.shape[0]
    out = pl.pallas_call(
        _gamma_kernel,
        out_shape=jax.ShapeDtypeStruct(x2.shape, x.dtype),
        grid=(rows // tm,),
        in_specs=[pl.BlockSpec((tm, LANE), lambda i: (i, 0))],
        out_specs=pl.BlockSpec((tm, LANE), lambda i: (i, 0)),
        compiler_params=pltpu.CompilerParams(dimension_semantics=("parallel",)),
    )(x2)
    return _from_slab(out, n, x.shape)


def _learn(x, packed_params):
    x2, tm, n = _to_slab(x, TM_LEARN, SUB)
    rows = x2.shape[0]
    out = pl.pallas_call(
        _learn_kernel,
        out_shape=jax.ShapeDtypeStruct(x2.shape, x.dtype),
        grid=(rows // tm,),
        in_specs=[
            pl.BlockSpec((tm, LANE), lambda i: (i, 0)),
            # all MLP parameters live in SMEM as one untiled scalar table
            pl.BlockSpec(memory_space=pltpu.MemorySpace.SMEM),
        ],
        out_specs=pl.BlockSpec((tm, LANE), lambda i: (i, 0)),
        compiler_params=pltpu.CompilerParams(dimension_semantics=("parallel",)),
    )(x2, packed_params)
    return _from_slab(out, n, x.shape)


def init_learn_params(key):
    """Deterministic params for the 1->16->16->16->1 MLP (PyTorch Linear-style init)."""
    ks = jax.random.split(key, 8)

    def lin(kw, kb, fan_in, fan_out):
        bound = 1.0 / math.sqrt(fan_in)
        w = jax.random.uniform(kw, (fan_in, fan_out), jnp.float32, -bound, bound)
        b = jax.random.uniform(kb, (1, fan_out), jnp.float32, -bound, bound)
        return w, b

    w1, b1 = lin(ks[0], ks[1], 1, 16)
    w2, b2 = lin(ks[2], ks[3], 16, 16)
    w3, b3 = lin(ks[4], ks[5], 16, 16)
    w4, b4 = lin(ks[6], ks[7], 16, 1)
    return dict(w1=w1, b1=b1, w2=w2, b2=b2, w3=w3, b3=b3,
                w4=w4.reshape(1, 16), b4=b4.reshape(1, 1))


def pack_learn_params(p):
    """Pack all weights/biases into one (593,) f32 array (row-major [in, out] for W2/W3)."""
    packed = jnp.concatenate([
        p["w1"].reshape(-1), p["b1"].reshape(-1),
        p["w2"].reshape(-1), p["b2"].reshape(-1),
        p["w3"].reshape(-1), p["b3"].reshape(-1),
        p["w4"].reshape(-1), p["b4"].reshape(-1),
    ]).astype(jnp.float32)
    assert packed.shape[0] == _NPARAMS
    return packed


def tone_mapping(x, map_type, params=None):
    assert map_type in ("none", "gamma", "learn", "ycbcr")
    if map_type == "none":
        return x
    if map_type == "gamma":
        return _gamma(x)
    if map_type == "learn":
        return _learn(x, pack_learn_params(params))
    # TODO(synk): 'ycbcr' hits `assert RuntimeError(...)` in the reference, i.e. it is not
    # implemented there either.
    raise RuntimeError("map_type 'ycbcr' not implemented in reference forward")


# --------------------------- pure-JAX reference ------------------------------

def _ref_learn(x, p):
    xi = x.reshape(-1, 1)
    h = jnp.maximum(xi @ p["w1"] + p["b1"], 0.0)
    h = jnp.maximum(h @ p["w2"] + p["b2"], 0.0)
    h = jnp.maximum(h @ p["w3"] + p["b3"], 0.0)
    res = h @ p["w4"].reshape(16, 1) + p["b4"]
    return jax.nn.sigmoid(res * 0.1 + xi).reshape(x.shape)


if __name__ == "__main__":
    key = jax.random.PRNGKey(0)
    kx, kp = jax.random.split(key)

    # NCHW input, nonnegative (radiance-like), small shape.
    x = jax.random.uniform(kx, (2, 4, 16, 16), jnp.float32)

    # 'none'
    y_none = jax.block_until_ready(tone_mapping(x, "none"))
    assert jnp.array_equal(y_none, x)

    # 'gamma'
    y_gamma = jax.block_until_ready(tone_mapping(x, "gamma"))
    assert jnp.allclose(y_gamma, x ** INV_GAMMA, rtol=1e-5, atol=1e-6)

    # 'learn'
    params = init_learn_params(kp)
    y_learn = jax.block_until_ready(tone_mapping(x, "learn", params))
    assert y_learn.shape == x.shape and y_learn.dtype == x.dtype
    assert jnp.allclose(y_learn, _ref_learn(x, params), rtol=1e-5, atol=1e-5)

    print("KERNEL_OK")
</pallas_src>

<mosaic_0001>
module attributes {stable_mosaic.version = 11 : i64} {
  func.func @_gamma_kernel(%arg0: i32, %arg1: memref<16x128xf32, #tpu.memory_space<vmem>>, %arg2: memref<16x128xf32, #tpu.memory_space<vmem>>) attributes {dimension_semantics = [#tpu.dimension_semantics<parallel>], iteration_bounds = array<i64: 1>, scalar_prefetch = 0 : i64, scratch_operands = 0 : i64, tpu.core_type = #tpu.core_type<tc>, window_params = [{transform_indices = @transform_0, window_bounds = array<i64: 16, 128>}, {transform_indices = @transform_1, window_bounds = array<i64: 16, 128>}]} {
    %c0 = arith.constant 0 : index
    %c0_0 = arith.constant 0 : index
    %0 = vector.load %arg1[%c0, %c0_0] : memref<16x128xf32, #tpu.memory_space<vmem>>, vector<16x128xf32>
    %1 = math.log %0 : vector<16x128xf32>
    %cst = arith.constant 0.454545468 : f32
    %2 = vector.broadcast %cst : f32 to vector<16x128xf32>
    %3 = arith.mulf %1, %2 : vector<16x128xf32>
    %4 = math.exp %3 : vector<16x128xf32>
    %c0_1 = arith.constant 0 : index
    %c0_2 = arith.constant 0 : index
    %5 = vector.load %arg2[%c0_1, %c0_2] : memref<16x128xf32, #tpu.memory_space<vmem>>, vector<16x128xf32>
    tpu.vector_store %arg2[%c0_1, %c0_2], %4 {strides = array<i32>} : memref<16x128xf32, #tpu.memory_space<vmem>>, vector<16x128xf32>,
    return
  }
  func.func @transform_0(%arg0: i32) -> (i32, i32) {
    %c0_i32 = arith.constant 0 : i32
    %c0_i32_0 = arith.constant 0 : i32
    return %arg0, %c0_i32 : i32, i32
  }
  func.func @transform_1(%arg0: i32) -> (i32, i32) {
    %c0_i32 = arith.constant 0 : i32
    %c0_i32_0 = arith.constant 0 : i32
    return %arg0, %c0_i32 : i32, i32
  }
}

</mosaic_0001>

<llo_original>
// kernel: tpu_custom_call.1
$region0: #{tpu_custom_call.1}
  #allocation0 [shape = 'u32[]', space=smem, size = 0x4, offset = 0x4, fixed_abs, tag = 'smem constant byte address 0x4 - core index']
  #allocation1 [shape = 'u32[72,128]{1,0:T(1,128)}', space=vmem, size = 0x9000, scoped, tag = 'internal scratch']
  %s0 = inlined_call_operand.hbm [shape: f32[16,128], index: 0, kind: input, shape index: {}]
  %s1 = inlined_call_operand.hbm [shape: f32[16,128], index: 1, kind: output, shape index: {}]
  %s2 = sld [smem:[#allocation0]]
  $region18: #{tpu_custom_call.1} parent=0
    _
  %s4 = ssub.s32 1, %s2
  %s5 = scalar_select 0, %s4, %s2
  $region1: #{tpu_custom_call.1} parent=0
    #allocation2 [shape = 'u8[8192]{0}', space=vmem, size = 0x2000, scoped, tag = 'input window, operand 0, single buffered']
    #allocation3 [shape = 's32[1]{0}', space=sflag, size = 0x4, scoped, tag = 'scoped memory for tpu_custom_call.1']
    #allocation4 [shape = 's32[1]{0}', space=sflag, size = 0x4, scoped, tag = 'scoped memory for tpu_custom_call.1']
    #allocation5 [shape = 'u8[8192]{0}', space=vmem, size = 0x2000, scoped, tag = 'output window, operand 0, single buffered']
    %6 = vsyncpa [#allocation3], 0
    %7 = vsyncpa [#allocation4], 0
    // Predicated region
    $region2: #{tpu_custom_call.1} parent=1 // pred_check
      _
    $region3: #{tpu_custom_call.1} parent=1 // pred_check_branch
      %9 = sbr.rel (0) target = $region5
    $region4: #{tpu_custom_call.1} parent=1 // pred_region
      %11 = vsyncadd [#allocation3], 0
      %s12 = sshll.u32 %s0, 4
      %s13 = int_to_ptr.hbm [resolvable:$true] %s12
      %s14 = sshll.u32 [#allocation2], 4
      %s15 = int_to_ptr.vmem [resolvable:$true] %s14
      %20 = dma.hbm_to_vmem [thread:$0]  %s13, 256, %s15, [#allocation3], 128, 128, 8
    $region5: #{tpu_custom_call.1} parent=1 // pred_fallthru
      _
    // Predicated region
    $region6: #{tpu_custom_call.1} parent=1 // pred_check
      _
    $region7: #{tpu_custom_call.1} parent=1 // pred_check_branch
      %22 = sbr.rel (0) target = $region9
    $region8: #{tpu_custom_call.1} parent=1 // pred_region
      %24 = dma.done [#allocation3], 256
    $region9: #{tpu_custom_call.1} parent=1 // pred_fallthru
      _
    %v25 = vld [vmem:[#allocation2] sm:$0xff]
    %v26 = vld [vmem:[#allocation2 + $0x8] sm:$0xff]
    %v27 = vlog2.pop %v25
    %v28 = vmul.f32 %v27, 0.6931472
    %v29 = vlog2.pop %v26
    %v30 = vmul.f32 %v29, 0.6931472
    %v31 = vmul.f32 %v28, 0.45454547
    %v32 = vmul.f32 %v30, 0.45454547
    %v33 = vmul.f32 %v31, 1.442695
    %v34 = vpow.pop %v33
    %v35 = vmul.f32 %v32, 1.442695
    %v36 = vpow.pop %v35
    %37 = vst [vmem:[#allocation5] sm:$0xff] %v34
    %38 = vst [vmem:[#allocation5 + $0x8] sm:$0xff] %v36
    // Predicated region
    $region10: #{tpu_custom_call.1} parent=1 // pred_check
      _
    $region11: #{tpu_custom_call.1} parent=1 // pred_check_branch
      %40 = sbr.rel (0) target = $region13
    $region12: #{tpu_custom_call.1} parent=1 // pred_region
      %42 = vsyncadd [#allocation4], 0
      %s43 = sshll.u32 [#allocation5], 4
      %s44 = int_to_ptr.vmem [resolvable:$true] %s43
      %s45 = sshll.u32 %s1, 4
      %s46 = int_to_ptr.hbm [resolvable:$true] %s45
      %51 = dma.vmem_to_hbm [thread:$0]  %s44, 256, %s46, [#allocation4], 128, 128, 8
    $region13: #{tpu_custom_call.1} parent=1 // pred_fallthru
      _
    // Predicated region
    $region14: #{tpu_custom_call.1} parent=1 // pred_check
      _
    $region15: #{tpu_custom_call.1} parent=1 // pred_check_branch
      %53 = sbr.rel (0) target = $region17
    $region16: #{tpu_custom_call.1} parent=1 // pred_region
      %55 = dma.done [#allocation4], 256
    $region17: #{tpu_custom_call.1} parent=1 // pred_fallthru
      _
    %56 = vsyncpa [#allocation3], 1
    %57 = vsyncpa [#allocation4], 1

</llo_original>
